<compile_context>
chip_gen: v6e
topology: v6e:2x2x1
jax: 0.10.0
libtpu: 0.0.40
codegen_flags: <defaults>
</compile_context>

<pallas_src>
import functools

import jax
import jax.numpy as jnp
from jax import lax
from jax.experimental import pallas as pl
from jax.experimental.pallas import tpu as pltpu


def _pick_block_tokens(seq_len, target=128):
    """Largest multiple-of-8 divisor of seq_len that is <= target (seq_len % 8 == 0)."""
    best = 8
    for t in range(8, min(target, seq_len) + 1, 8):
        if seq_len % t == 0:
            best = t
    return best


def _vmem_budget_bytes():
    """Generation-aware per-TensorCore VMEM budget with ~15% headroom for Mosaic
    internal scratch / semaphores / double-buffered output tiles."""
    cap = 64 << 20  # conservative fallback (v7x per-TC VMEM)
    try:
        info = pltpu.get_tpu_info()
        cap = int(getattr(info, "vmem_capacity_bytes", cap))
    except Exception:
        pass
    return int(cap * 0.85)


def _resident_kernel(L, T, V, unroll, ids_ref, tok_ref, pos_ref, out_ref):
    """Token table VMEM-resident; fused gather + position add, one write per row."""
    b = pl.program_id(0)
    j = pl.program_id(1)
    base = b * L + j * T

    def body(t, carry):
        # Scalar clamp rides the idle scalar-ALU slots (nn.Embedding would raise on OOB).
        row = jnp.clip(ids_ref[base + t], 0, V - 1)
        tok = tok_ref[pl.ds(row, 1), :].astype(jnp.float32)
        pos = pos_ref[pl.ds(t, 1), :].astype(jnp.float32)
        # Fused: each output row written exactly once (no dense RMW pass).
        out_ref[pl.ds(t, 1), :] = (tok + pos).astype(out_ref.dtype)
        return carry

    lax.fori_loop(0, T, body, 0, unroll=unroll)


def _hbm_gather_kernel(L, T, V, ids_ref, tok_hbm, pos_ref, out_ref, gather_buf, sem):
    """Token table in HBM; per-row async-copy gather into VMEM scratch, then one
    dense (T, D) add and one unmasked lane-dense store."""
    b = pl.program_id(0)
    j = pl.program_id(1)
    base = b * L + j * T

    # Issue all T row DMAs; they run on the DMA engine and stay off the vld/vst slots.
    @pl.loop(0, T)
    def _(t):
        row = jnp.clip(ids_ref[base + t], 0, V - 1)
        pltpu.make_async_copy(
            tok_hbm.at[pl.ds(row, 1), :], gather_buf.at[pl.ds(t, 1), :], sem
        ).start()

    # Drain: every row copy signaled `sem` with one row's byte count.
    @pl.loop(0, T)
    def _(t):
        pltpu.make_async_copy(
            tok_hbm.at[pl.ds(0, 1), :], gather_buf.at[pl.ds(t, 1), :], sem
        ).wait()

    out_ref[...] = (
        gather_buf[...].astype(jnp.float32) + pos_ref[...].astype(jnp.float32)
    ).astype(out_ref.dtype)


def embedding_forward(input_ids, token_table, pos_table, *, block_tokens=None,
                      force_hbm_gather=False):
    """token_table[input_ids] + pos_table[arange(L)]  ->  (B, L, D)."""
    B, L = input_ids.shape
    V, D = token_table.shape
    L_max, D2 = pos_table.shape
    assert D == D2, "embedding dims must match"
    assert L == L_max, "seq length must equal max_length (the PyTorch add requires it)"
    assert D % 128 == 0, "embedding dim must be lane-dense (multiple of 128)"
    # TODO(synk): pad D to a multiple of 128 if a non-multiple ever appears.

    out_dtype = jnp.promote_types(token_table.dtype, pos_table.dtype)

    # Pad the sequence to a multiple of 8 so the (T, D) output tile stays sublane-dense.
    L_pad = ((L + 7) // 8) * 8
    ids = input_ids.astype(jnp.int32)
    pos = pos_table
    if L_pad != L:
        ids = jnp.pad(ids, ((0, 0), (0, L_pad - L)))
        pos = jnp.pad(pos, ((0, L_pad - L), (0, 0)))

    T = block_tokens if block_tokens is not None else _pick_block_tokens(L_pad)
    assert L_pad % T == 0 and T % 8 == 0, "block_tokens must be a mult-of-8 divisor of L"
    num_seq_blocks = L_pad // T

    flat_ids = ids.reshape(-1)  # 1-D scalar prefetch (avoids 2-D SMEM padding blowup)

    itemsize = jnp.dtype(out_dtype).itemsize
    tile_bytes = T * D * itemsize
    resident_bytes = V * D * jnp.dtype(token_table.dtype).itemsize
    # pos tile + out tile are double-buffered by the pipeline; margin for Mosaic scratch.
    common_bytes = 4 * tile_bytes + (2 << 20)
    budget = _vmem_budget_bytes()

    use_resident = (not force_hbm_gather) and (resident_bytes + common_bytes) <= budget

    pos_spec = pl.BlockSpec((T, D), lambda b, j, _ids: (j, 0))
    out_spec = pl.BlockSpec((None, T, D), lambda b, j, _ids: (b, j, 0))

    if use_resident:
        kernel = functools.partial(_resident_kernel, L_pad, T, V, min(T, 8))
        in_specs = [
            # Whole token table VMEM-resident: a memory-space-only BlockSpec is a
            # single un-pipelined buffer (fetched once, not double-buffered).
            pl.BlockSpec(memory_space=pltpu.MemorySpace.VMEM),
            pos_spec,
        ]
        scratch_shapes = []
        needed = resident_bytes + common_bytes
    else:
        kernel = functools.partial(_hbm_gather_kernel, L_pad, T, V)
        in_specs = [
            pl.BlockSpec(memory_space=pl.ANY),  # token table stays in HBM
            pos_spec,
        ]
        scratch_shapes = [
            pltpu.VMEM((T, D), token_table.dtype),
            pltpu.SemaphoreType.DMA(()),
        ]
        needed = tile_bytes + common_bytes

    if needed > budget:
        raise ValueError(
            f"embedding_forward: need ~{needed} bytes of VMEM but budget is {budget}; "
            f"reduce block_tokens or use force_hbm_gather=True")

    vmem_limit = int(min(max(needed, 32 << 20), budget))

    grid_spec = pltpu.PrefetchScalarGridSpec(
        num_scalar_prefetch=1,                 # flat_ids -> SMEM
        grid=(B, num_seq_blocks),
        in_specs=in_specs,
        out_specs=out_spec,
        scratch_shapes=scratch_shapes,
    )

    out = pl.pallas_call(
        kernel,
        out_shape=jax.ShapeDtypeStruct((B, L_pad, D), out_dtype),
        grid_spec=grid_spec,
        compiler_params=pltpu.CompilerParams(
            dimension_semantics=("parallel", "parallel"),
            vmem_limit_bytes=vmem_limit,
        ),
    )(flat_ids, token_table, pos)

    if L_pad != L:
        out = out[:, :L, :]
    return out


if __name__ == "__main__":
    # Small, deterministic configuration.
    vocab_size = 64
    embedding_dim = 128
    max_length = 8
    batch = 2

    key = jax.random.PRNGKey(0)
    k_tok, k_pos, k_ids = jax.random.split(key, 3)

    # nn.Embedding default init: N(0, 1).
    token_table = jax.random.normal(k_tok, (vocab_size, embedding_dim), dtype=jnp.float32)
    pos_table = jax.random.normal(k_pos, (max_length, embedding_dim), dtype=jnp.float32)
    input_ids = jax.random.randint(k_ids, (batch, max_length), 0, vocab_size, dtype=jnp.int32)

    # Pure-JAX reference (same semantics as the PyTorch module).
    ref = jnp.take(token_table, input_ids, axis=0) + pos_table[None, :, :]

    # Path A: VMEM-resident token table (small vocab / v5e / v6e BERT-base).
    out_resident = jax.block_until_ready(
        embedding_forward(input_ids, token_table, pos_table))
    assert out_resident.shape == (batch, max_length, embedding_dim)
    assert jnp.allclose(out_resident, ref, atol=1e-6), "resident path mismatch vs reference"

    # Path B: HBM token table + async row-gather DMA (vocab too large for VMEM, e.g. v7x).
    out_hbm = jax.block_until_ready(
        embedding_forward(input_ids, token_table, pos_table, force_hbm_gather=True))
    assert jnp.allclose(out_hbm, ref, atol=1e-6), "hbm-gather path mismatch vs reference"

    print("KERNEL_OK")
</pallas_src>

<mosaic_0001>
module attributes {stable_mosaic.version = 11 : i64} {
  func.func @_resident_kernel(%arg0: i32, %arg1: i32, %arg2: memref<16xi32, #tpu.memory_space<smem>>, %arg3: memref<64x128xf32, #tpu.memory_space<vmem>>, %arg4: memref<8x128xf32, #tpu.memory_space<vmem>>, %arg5: memref<1x8x128xf32, #tpu.memory_space<vmem>>) attributes {dimension_semantics = [#tpu.dimension_semantics<parallel>, #tpu.dimension_semantics<parallel>], iteration_bounds = array<i64: 2, 1>, scalar_prefetch = 1 : i64, scratch_operands = 0 : i64, tpu.core_type = #tpu.core_type<tc>, window_params = [{pipeline_mode = #tpu.pipeline_mode<synchronous>, transform_indices = @transform_0, window_bounds = array<i64: 64, 128>}, {transform_indices = @transform_1, window_bounds = array<i64: 8, 128>}, {transform_indices = @transform_2, window_bounds = array<i64: 1, 8, 128>}]} {
    %c8_i32 = arith.constant 8 : i32
    %0 = arith.muli %arg0, %c8_i32 : i32
    %c8_i32_0 = arith.constant 8 : i32
    %1 = arith.muli %arg1, %c8_i32_0 : i32
    %2 = arith.addi %0, %1 : i32
    %c0_i32 = arith.constant 0 : i32
    %3 = arith.addi %2, %c0_i32 : i32
    %4 = arith.index_cast %3 : i32 to index
    %5 = memref.load %arg2[%4] : memref<16xi32, #tpu.memory_space<smem>>
    %c0_i32_1 = arith.constant 0 : i32
    %c63_i32 = arith.constant 63 : i32
    %6 = arith.maxsi %c0_i32_1, %5 : i32
    %7 = arith.minsi %c63_i32, %6 : i32
    %8 = arith.index_cast %7 : i32 to index
    %c0 = arith.constant 0 : index
    %9 = vector.load %arg3[%8, %c0] : memref<64x128xf32, #tpu.memory_space<vmem>>, vector<1x128xf32>
    %10 = arith.index_cast %c0_i32 : i32 to index
    %c0_2 = arith.constant 0 : index
    %11 = vector.load %arg4[%10, %c0_2] : memref<8x128xf32, #tpu.memory_space<vmem>>, vector<1x128xf32>
    %12 = arith.addf %9, %11 : vector<1x128xf32>
    %c0_3 = arith.constant 0 : index
    %13 = arith.index_cast %c0_i32 : i32 to index
    %c0_4 = arith.constant 0 : index
    %14 = vector.load %arg5[%c0_3, %13, %c0_4] : memref<1x8x128xf32, #tpu.memory_space<vmem>>, vector<1x1x128xf32>
    %15 = vector.shape_cast %14 : vector<1x1x128xf32> to vector<1x128xf32>
    %16 = vector.shape_cast %12 : vector<1x128xf32> to vector<1x1x128xf32>
    tpu.vector_store %arg5[%c0_3, %13, %c0_4], %16 {strides = array<i32>} : memref<1x8x128xf32, #tpu.memory_space<vmem>>, vector<1x1x128xf32>,
    %c1_i32 = arith.constant 1 : i32
    %17 = arith.addi %2, %c1_i32 : i32
    %18 = arith.index_cast %17 : i32 to index
    %19 = memref.load %arg2[%18] : memref<16xi32, #tpu.memory_space<smem>>
    %c0_i32_5 = arith.constant 0 : i32
    %c63_i32_6 = arith.constant 63 : i32
    %20 = arith.maxsi %c0_i32_5, %19 : i32
    %21 = arith.minsi %c63_i32_6, %20 : i32
    %22 = arith.index_cast %21 : i32 to index
    %c0_7 = arith.constant 0 : index
    %23 = vector.load %arg3[%22, %c0_7] : memref<64x128xf32, #tpu.memory_space<vmem>>, vector<1x128xf32>
    %24 = arith.index_cast %c1_i32 : i32 to index
    %c0_8 = arith.constant 0 : index
    %25 = vector.load %arg4[%24, %c0_8] : memref<8x128xf32, #tpu.memory_space<vmem>>, vector<1x128xf32>
    %26 = arith.addf %23, %25 : vector<1x128xf32>
    %c0_9 = arith.constant 0 : index
    %27 = arith.index_cast %c1_i32 : i32 to index
    %c0_10 = arith.constant 0 : index
    %28 = vector.load %arg5[%c0_9, %27, %c0_10] : memref<1x8x128xf32, #tpu.memory_space<vmem>>, vector<1x1x128xf32>
    %29 = vector.shape_cast %28 : vector<1x1x128xf32> to vector<1x128xf32>
    %30 = vector.shape_cast %26 : vector<1x128xf32> to vector<1x1x128xf32>
    tpu.vector_store %arg5[%c0_9, %27, %c0_10], %30 {strides = array<i32>} : memref<1x8x128xf32, #tpu.memory_space<vmem>>, vector<1x1x128xf32>,
    %c2_i32 = arith.constant 2 : i32
    %31 = arith.addi %2, %c2_i32 : i32
    %32 = arith.index_cast %31 : i32 to index
    %33 = memref.load %arg2[%32] : memref<16xi32, #tpu.memory_space<smem>>
    %c0_i32_11 = arith.constant 0 : i32
    %c63_i32_12 = arith.constant 63 : i32
    %34 = arith.maxsi %c0_i32_11, %33 : i32
    %35 = arith.minsi %c63_i32_12, %34 : i32
    %36 = arith.index_cast %35 : i32 to index
    %c0_13 = arith.constant 0 : index
    %37 = vector.load %arg3[%36, %c0_13] : memref<64x128xf32, #tpu.memory_space<vmem>>, vector<1x128xf32>
    %38 = arith.index_cast %c2_i32 : i32 to index
    %c0_14 = arith.constant 0 : index
    %39 = vector.load %arg4[%38, %c0_14] : memref<8x128xf32, #tpu.memory_space<vmem>>, vector<1x128xf32>
    %40 = arith.addf %37, %39 : vector<1x128xf32>
    %c0_15 = arith.constant 0 : index
    %41 = arith.index_cast %c2_i32 : i32 to index
    %c0_16 = arith.constant 0 : index
    %42 = vector.load %arg5[%c0_15, %41, %c0_16] : memref<1x8x128xf32, #tpu.memory_space<vmem>>, vector<1x1x128xf32>
    %43 = vector.shape_cast %42 : vector<1x1x128xf32> to vector<1x128xf32>
    %44 = vector.shape_cast %40 : vector<1x128xf32> to vector<1x1x128xf32>
    tpu.vector_store %arg5[%c0_15, %41, %c0_16], %44 {strides = array<i32>} : memref<1x8x128xf32, #tpu.memory_space<vmem>>, vector<1x1x128xf32>,
    %c3_i32 = arith.constant 3 : i32
    %45 = arith.addi %2, %c3_i32 : i32
    %46 = arith.index_cast %45 : i32 to index
    %47 = memref.load %arg2[%46] : memref<16xi32, #tpu.memory_space<smem>>
    %c0_i32_17 = arith.constant 0 : i32
    %c63_i32_18 = arith.constant 63 : i32
    %48 = arith.maxsi %c0_i32_17, %47 : i32
    %49 = arith.minsi %c63_i32_18, %48 : i32
    %50 = arith.index_cast %49 : i32 to index
    %c0_19 = arith.constant 0 : index
    %51 = vector.load %arg3[%50, %c0_19] : memref<64x128xf32, #tpu.memory_space<vmem>>, vector<1x128xf32>
    %52 = arith.index_cast %c3_i32 : i32 to index
    %c0_20 = arith.constant 0 : index
    %53 = vector.load %arg4[%52, %c0_20] : memref<8x128xf32, #tpu.memory_space<vmem>>, vector<1x128xf32>
    %54 = arith.addf %51, %53 : vector<1x128xf32>
    %c0_21 = arith.constant 0 : index
    %55 = arith.index_cast %c3_i32 : i32 to index
    %c0_22 = arith.constant 0 : index
    %56 = vector.load %arg5[%c0_21, %55, %c0_22] : memref<1x8x128xf32, #tpu.memory_space<vmem>>, vector<1x1x128xf32>
    %57 = vector.shape_cast %56 : vector<1x1x128xf32> to vector<1x128xf32>
    %58 = vector.shape_cast %54 : vector<1x128xf32> to vector<1x1x128xf32>
    tpu.vector_store %arg5[%c0_21, %55, %c0_22], %58 {strides = array<i32>} : memref<1x8x128xf32, #tpu.memory_space<vmem>>, vector<1x1x128xf32>,
    %c4_i32 = arith.constant 4 : i32
    %59 = arith.addi %2, %c4_i32 : i32
    %60 = arith.index_cast %59 : i32 to index
    %61 = memref.load %arg2[%60] : memref<16xi32, #tpu.memory_space<smem>>
    %c0_i32_23 = arith.constant 0 : i32
    %c63_i32_24 = arith.constant 63 : i32
    %62 = arith.maxsi %c0_i32_23, %61 : i32
    %63 = arith.minsi %c63_i32_24, %62 : i32
    %64 = arith.index_cast %63 : i32 to index
    %c0_25 = arith.constant 0 : index
    %65 = vector.load %arg3[%64, %c0_25] : memref<64x128xf32, #tpu.memory_space<vmem>>, vector<1x128xf32>
    %66 = arith.index_cast %c4_i32 : i32 to index
    %c0_26 = arith.constant 0 : index
    %67 = vector.load %arg4[%66, %c0_26] : memref<8x128xf32, #tpu.memory_space<vmem>>, vector<1x128xf32>
    %68 = arith.addf %65, %67 : vector<1x128xf32>
    %c0_27 = arith.constant 0 : index
    %69 = arith.index_cast %c4_i32 : i32 to index
    %c0_28 = arith.constant 0 : index
    %70 = vector.load %arg5[%c0_27, %69, %c0_28] : memref<1x8x128xf32, #tpu.memory_space<vmem>>, vector<1x1x128xf32>
    %71 = vector.shape_cast %70 : vector<1x1x128xf32> to vector<1x128xf32>
    %72 = vector.shape_cast %68 : vector<1x128xf32> to vector<1x1x128xf32>
    tpu.vector_store %arg5[%c0_27, %69, %c0_28], %72 {strides = array<i32>} : memref<1x8x128xf32, #tpu.memory_space<vmem>>, vector<1x1x128xf32>,
    %c5_i32 = arith.constant 5 : i32
    %73 = arith.addi %2, %c5_i32 : i32
    %74 = arith.index_cast %73 : i32 to index
    %75 = memref.load %arg2[%74] : memref<16xi32, #tpu.memory_space<smem>>
    %c0_i32_29 = arith.constant 0 : i32
    %c63_i32_30 = arith.constant 63 : i32
    %76 = arith.maxsi %c0_i32_29, %75 : i32
    %77 = arith.minsi %c63_i32_30, %76 : i32
    %78 = arith.index_cast %77 : i32 to index
    %c0_31 = arith.constant 0 : index
    %79 = vector.load %arg3[%78, %c0_31] : memref<64x128xf32, #tpu.memory_space<vmem>>, vector<1x128xf32>
    %80 = arith.index_cast %c5_i32 : i32 to index
    %c0_32 = arith.constant 0 : index
    %81 = vector.load %arg4[%80, %c0_32] : memref<8x128xf32, #tpu.memory_space<vmem>>, vector<1x128xf32>
    %82 = arith.addf %79, %81 : vector<1x128xf32>
    %c0_33 = arith.constant 0 : index
    %83 = arith.index_cast %c5_i32 : i32 to index
    %c0_34 = arith.constant 0 : index
    %84 = vector.load %arg5[%c0_33, %83, %c0_34] : memref<1x8x128xf32, #tpu.memory_space<vmem>>, vector<1x1x128xf32>
    %85 = vector.shape_cast %84 : vector<1x1x128xf32> to vector<1x128xf32>
    %86 = vector.shape_cast %82 : vector<1x128xf32> to vector<1x1x128xf32>
    tpu.vector_store %arg5[%c0_33, %83, %c0_34], %86 {strides = array<i32>} : memref<1x8x128xf32, #tpu.memory_space<vmem>>, vector<1x1x128xf32>,
    %c6_i32 = arith.constant 6 : i32
    %87 = arith.addi %2, %c6_i32 : i32
    %88 = arith.index_cast %87 : i32 to index
    %89 = memref.load %arg2[%88] : memref<16xi32, #tpu.memory_space<smem>>
    %c0_i32_35 = arith.constant 0 : i32
    %c63_i32_36 = arith.constant 63 : i32
    %90 = arith.maxsi %c0_i32_35, %89 : i32
    %91 = arith.minsi %c63_i32_36, %90 : i32
    %92 = arith.index_cast %91 : i32 to index
    %c0_37 = arith.constant 0 : index
    %93 = vector.load %arg3[%92, %c0_37] : memref<64x128xf32, #tpu.memory_space<vmem>>, vector<1x128xf32>
    %94 = arith.index_cast %c6_i32 : i32 to index
    %c0_38 = arith.constant 0 : index
    %95 = vector.load %arg4[%94, %c0_38] : memref<8x128xf32, #tpu.memory_space<vmem>>, vector<1x128xf32>
    %96 = arith.addf %93, %95 : vector<1x128xf32>
    %c0_39 = arith.constant 0 : index
    %97 = arith.index_cast %c6_i32 : i32 to index
    %c0_40 = arith.constant 0 : index
    %98 = vector.load %arg5[%c0_39, %97, %c0_40] : memref<1x8x128xf32, #tpu.memory_space<vmem>>, vector<1x1x128xf32>
    %99 = vector.shape_cast %98 : vector<1x1x128xf32> to vector<1x128xf32>
    %100 = vector.shape_cast %96 : vector<1x128xf32> to vector<1x1x128xf32>
    tpu.vector_store %arg5[%c0_39, %97, %c0_40], %100 {strides = array<i32>} : memref<1x8x128xf32, #tpu.memory_space<vmem>>, vector<1x1x128xf32>,
    %c7_i32 = arith.constant 7 : i32
    %101 = arith.addi %2, %c7_i32 : i32
    %102 = arith.index_cast %101 : i32 to index
    %103 = memref.load %arg2[%102] : memref<16xi32, #tpu.memory_space<smem>>
    %c0_i32_41 = arith.constant 0 : i32
    %c63_i32_42 = arith.constant 63 : i32
    %104 = arith.maxsi %c0_i32_41, %103 : i32
    %105 = arith.minsi %c63_i32_42, %104 : i32
    %106 = arith.index_cast %105 : i32 to index
    %c0_43 = arith.constant 0 : index
    %107 = vector.load %arg3[%106, %c0_43] : memref<64x128xf32, #tpu.memory_space<vmem>>, vector<1x128xf32>
    %108 = arith.index_cast %c7_i32 : i32 to index
    %c0_44 = arith.constant 0 : index
    %109 = vector.load %arg4[%108, %c0_44] : memref<8x128xf32, #tpu.memory_space<vmem>>, vector<1x128xf32>
    %110 = arith.addf %107, %109 : vector<1x128xf32>
    %c0_45 = arith.constant 0 : index
    %111 = arith.index_cast %c7_i32 : i32 to index
    %c0_46 = arith.constant 0 : index
    %112 = vector.load %arg5[%c0_45, %111, %c0_46] : memref<1x8x128xf32, #tpu.memory_space<vmem>>, vector<1x1x128xf32>
    %113 = vector.shape_cast %112 : vector<1x1x128xf32> to vector<1x128xf32>
    %114 = vector.shape_cast %110 : vector<1x128xf32> to vector<1x1x128xf32>
    tpu.vector_store %arg5[%c0_45, %111, %c0_46], %114 {strides = array<i32>} : memref<1x8x128xf32, #tpu.memory_space<vmem>>, vector<1x1x128xf32>,
    %c8_i32_47 = arith.constant 8 : i32
    return
  }
  func.func @transform_0(%arg0: i32, %arg1: i32, %arg2: memref<16xi32, #tpu.memory_space<smem>>) -> (i32, i32) {
    %c0_i32 = arith.constant 0 : i32
    %c0_i32_0 = arith.constant 0 : i32
    %c0_i32_1 = arith.constant 0 : i32
    return %c0_i32, %c0_i32_0 : i32, i32
  }
  func.func @transform_1(%arg0: i32, %arg1: i32, %arg2: memref<16xi32, #tpu.memory_space<smem>>) -> (i32, i32) {
    %c0_i32 = arith.constant 0 : i32
    %c0_i32_0 = arith.constant 0 : i32
    return %arg1, %c0_i32 : i32, i32
  }
  func.func @transform_2(%arg0: i32, %arg1: i32, %arg2: memref<16xi32, #tpu.memory_space<smem>>) -> (i32, i32, i32) {
    %c0_i32 = arith.constant 0 : i32
    %c0_i32_0 = arith.constant 0 : i32
    return %arg0, %arg1, %c0_i32 : i32, i32, i32
  }
}

</mosaic_0001>

<llo_original>
// kernel: tpu_custom_call.1
$region0: #{tpu_custom_call.1}
  #allocation0 [shape = 'u32[]', space=smem, size = 0x4, offset = 0x4, fixed_abs, tag = 'smem constant byte address 0x4 - core index']
  #allocation1 [shape = 'u32[144,128]{1,0:T(1,128)}', space=vmem, size = 0x12000, scoped, tag = 'internal scratch']
  #allocation2 [shape = 's32[1]{0}', space=sflag, size = 0x4, scoped, tag = 'scoped memory for tpu_custom_call.1']
  #allocation3 [shape = 'u8[512]{0}', space=smem, size = 0x200, scoped, tag = 'prefetched SMEM operand 0']
  %s0 = inlined_call_operand.hbm [shape: s32[16], index: 0, kind: input, shape index: {}]
  %s1 = inlined_call_operand.hbm [shape: f32[64,128], index: 1, kind: input, shape index: {}]
  %s2 = inlined_call_operand.hbm [shape: f32[8,128], index: 2, kind: input, shape index: {}]
  %s3 = inlined_call_operand.hbm [shape: f32[2,8,128], index: 3, kind: output, shape index: {}]
  %s4 = sld [smem:[#allocation0]]
  $region49: #{tpu_custom_call.1} parent=0
    _
  %s6 = ssub.s32 1, %s4
  %s7 = scalar_select 0, %s6, %s4
  %9 = dma.hbm_to_smem %s0, 16, [#allocation3], [#allocation2]
  %10 = dma.done [#allocation2], 16
  %11 = sfence
  $region1: #{tpu_custom_call.1} parent=0
    #allocation4 [shape = 'u8[32768]{0}', space=vmem, size = 0x8000, scoped, tag = 'input window, operand 1, single buffered']
    #allocation5 [shape = 's32[2]{0}', space=sflag, size = 0x8, scoped, tag = 'scoped memory for tpu_custom_call.1']
    #allocation6 [shape = 's32[2]{0}', space=sflag, size = 0x8, scoped, tag = 'scoped memory for tpu_custom_call.1']
    #allocation7 [shape = 'u8[4096]{0}', space=vmem, size = 0x1000, scoped, tag = 'input window, operand 2, single buffered']
    #allocation8 [shape = 's32[1]{0}', space=sflag, size = 0x4, scoped, tag = 'scoped memory for tpu_custom_call.1']
    #allocation9 [shape = 'u8[8192]{0}', space=vmem, size = 0x2000, scoped, tag = 'output window, operand 0']
    %12 = vsyncpa [#allocation5], 0
    %13 = vsyncpa [#allocation8], 0
    %14 = vsyncpa [#allocation6], 0
    %s15 = scalar_lea.sflag [#allocation6], 1
    %16 = vsyncpa %s15, 0
    loop: start=0, step=1, limit=4
    $region2: #{tpu_custom_call.1} parent=1 // loop_pre_header
      _
    $region3: #{tpu_custom_call.1} parent=1 // loop_header
      %s18 = sphi 0, %s22
      %p19 = scmp.ge.s32.totalorder %s18, 4
      %s25 = sphi 0, %s37
      %s26 = sphi 0, %s33
      %s27 = sphi 0, %s25
      %s28 = sphi 0, %s26
      %s29 = sphi 0, %s27
      %s30 = sphi 0, %s28
      %s38 = sphi 0, %s38
      %s40 = sphi 0, %s38
      %s41 = sphi 0, %s40
      %s55 = sphi 0, %s41
      %s61 = sphi 0, %s63
      %s64 = sphi 0, %s61
      %s65 = sphi 0, %s64
      %s81 = sphi 0, %s65
      %s89 = sphi 0, %s91
      %s92 = sphi 0, %s89
      %s93 = sphi 0, %s92
      %s109 = sphi 0, %s93
    $region4: #{tpu_custom_call.1} parent=1 // loop_header_branch
      %21 = sbr.rel (%p19) target = $region8
    $region5: #{tpu_custom_call.1} parent=1 // loop_body
      %s23 = ssub.s32 %s18, 1
      %s24 = ssub.s32 %s18, 2
      %s31 = sadd.s32 1, %s26
      %p32 = scmp.ge.s32.totalorder %s31, 1
      %s33 = scalar_select %p32, 0, %s31
      %s34 = sadd.s32 1, %s25
      %s35 = scalar_select %p32, %s34, %s25
      %p36 = scmp.ge.s32.totalorder %s35, 2
      %s37 = scalar_select %p36, 0, %s35
      %s39 = sadd.s32 %s38, 1
      %p42 = scmp.eq.s32.totalorder %s18, 1
      %p43 = scmp.ne.s32.totalorder %s38, %s40
      %p44 = scmp.eq.s32.totalorder %s18, 0
      %p45 = por %p43, %p44
      %p46 = scmp.ne.s32.totalorder %s38, %s40
      %p47 = scmp.eq.s32.totalorder %s23, 1
      %p48 = por %p46, %p47
      %p49 = scmp.ne.s32.totalorder %s40, %s41
      %p50 = scmp.eq.s32.totalorder %s23, 0
      %p51 = por %p49, %p50
      %p52 = scmp.ne.s32.totalorder %s40, %s41
      %p53 = scmp.eq.s32.totalorder %s24, 1
      %p54 = por %p52, %p53
      %p56 = scmp.ne.s32.totalorder %s41, %s55
      %p57 = scmp.eq.s32.totalorder %s24, 0
      %p58 = por %p56, %p57
      %s59 = ssub.s32 %s26, %s33
      %p60 = scmp.eq.s32.totalorder %s59, 0
      %s62 = sadd.s32 %s61, 1
      %s63 = scalar_select %p60, %s61, %s62
      %p66 = pneg %p60
      %p67 = scmp.eq.s32.totalorder %s18, 1
      %p68 = por %p66, %p67
      %p69 = scmp.ne.s32.totalorder %s61, %s64
      %p70 = scmp.eq.s32.totalorder %s18, 0
      %p71 = por %p69, %p70
      %p72 = scmp.ne.s32.totalorder %s61, %s64
      %p73 = scmp.eq.s32.totalorder %s23, 1
      %p74 = por %p72, %p73
      %p75 = scmp.ne.s32.totalorder %s64, %s65
      %p76 = scmp.eq.s32.totalorder %s23, 0
      %p77 = por %p75, %p76
      %p78 = scmp.ne.s32.totalorder %s64, %s65
      %p79 = scmp.eq.s32.totalorder %s24, 1
      %p80 = por %p78, %p79
      %p82 = scmp.ne.s32.totalorder %s65, %s81
      %p83 = scmp.eq.s32.totalorder %s24, 0
      %p84 = por %p82, %p83
      %s85 = ssub.s32 %s25, %s37
      %s86 = ssub.s32 %s26, %s33
      %s87 = sor.u32 %s85, %s86
      %p88 = scmp.eq.s32.totalorder %s87, 0
      %s90 = sadd.s32 %s89, 1
      %s91 = scalar_select %p88, %s89, %s90
      %p94 = pneg %p88
      %p95 = scmp.eq.s32.totalorder %s18, 1
      %p96 = por %p94, %p95
      %p97 = scmp.ne.s32.totalorder %s89, %s92
      %p98 = scmp.eq.s32.totalorder %s18, 0
      %p99 = por %p97, %p98
      %p100 = scmp.ne.s32.totalorder %s89, %s92
      %p101 = scmp.eq.s32.totalorder %s23, 1
      %p102 = por %p100, %p101
      %p103 = scmp.ne.s32.totalorder %s92, %s93
      %p104 = scmp.eq.s32.totalorder %s23, 0
      %p105 = por %p103, %p104
      %p106 = scmp.ne.s32.totalorder %s92, %s93
      %p107 = scmp.eq.s32.totalorder %s24, 1
      %p108 = por %p106, %p107
      %p110 = scmp.ne.s32.totalorder %s93, %s109
      %p111 = scmp.eq.s32.totalorder %s24, 0
      %p112 = por %p110, %p111
      %p113 = scmp.le.s32.totalorder 1, %s18
      %p114 = scmp.lt.s32.totalorder %s18, 3
      %p115 = pnand %p113, %p114
      %p116 = pneg %p115
      // Predicated region
      $region9: #{tpu_custom_call.1} parent=5 // pred_check
        _
      $region10: #{tpu_custom_call.1} parent=5 // pred_check_branch
        %118 = sbr.rel (%p115) target = $region12
      $region11: #{tpu_custom_call.1} parent=5 // pred_region
        %s119 = ssub.s32 %s18, 1
        // Predicated region
        $region13: #{tpu_custom_call.1} parent=11 // pred_check
          %p120 = pneg %p51
        $region14: #{tpu_custom_call.1} parent=11 // pred_check_branch
          %122 = sbr.rel (%p120) target = $region16
        $region15: #{tpu_custom_call.1} parent=11 // pred_region
          %s124 = ssub.s32 1024, 1024
          %125 = vsyncadd [#allocation5], %s124
          %s126 = sshll.u32 [#allocation4], 4
          %s127 = int_to_ptr.vmem [resolvable:$true] %s126
          %132 = dma.hbm_to_vmem [thread:$0]  %s1, 1024, %s127, [#allocation5], 128, 128, 8
        $region16: #{tpu_custom_call.1} parent=11 // pred_fallthru
          _
        // Predicated region
        $region17: #{tpu_custom_call.1} parent=11 // pred_check
          %p133 = pneg %p77
        $region18: #{tpu_custom_call.1} parent=11 // pred_check_branch
          %135 = sbr.rel (%p133) target = $region20
        $region19: #{tpu_custom_call.1} parent=11 // pred_region
          %s137 = ssub.s32 128, 128
          %138 = vsyncadd [#allocation8], %s137
          %s139 = smul.addr %s28, 128
          %s140 = scalar_lea.hbm %s2, %s139
          %s142 = sshll.u32 [#allocation7], 4
          %s143 = int_to_ptr.vmem [resolvable:$true] %s142
          %145 = dma.hbm_to_vmem [thread:$0]  %s140, 128, %s143, [#allocation8]
        $region20: #{tpu_custom_call.1} parent=11 // pred_fallthru
          _
      $region12: #{tpu_custom_call.1} parent=5 // pred_fallthru
        _
      %p146 = scmp.lt.s32.totalorder %s18, 2
      // Predicated region
      $region21: #{tpu_custom_call.1} parent=5 // pred_check
        %p147 = pneg %p146
      $region22: #{tpu_custom_call.1} parent=5 // pred_check_branch
        %149 = sbr.rel (%p147) target = $region24
      $region23: #{tpu_custom_call.1} parent=5 // pred_region
        _
      $region24: #{tpu_custom_call.1} parent=5 // pred_fallthru
        _
      %p150 = scmp.le.s32.totalorder 1, %s18
      %p151 = scmp.lt.s32.totalorder %s18, 3
      %p152 = pnand %p150, %p151
      %p153 = pneg %p152
      // Predicated region
      $region25: #{tpu_custom_call.1} parent=5 // pred_check
        _
      $region26: #{tpu_custom_call.1} parent=5 // pred_check_branch
        %155 = sbr.rel (%p152) target = $region28
      $region27: #{tpu_custom_call.1} parent=5 // pred_region
        %s156 = ssub.s32 %s18, 1
        // Predicated region
        $region29: #{tpu_custom_call.1} parent=27 // pred_check
          %p157 = pneg %p51
        $region30: #{tpu_custom_call.1} parent=27 // pred_check_branch
          %159 = sbr.rel (%p157) target = $region32
        $region31: #{tpu_custom_call.1} parent=27 // pred_region
          %160 = dma.done [#allocation5], 1024
        $region32: #{tpu_custom_call.1} parent=27 // pred_fallthru
          _
        // Predicated region
        $region33: #{tpu_custom_call.1} parent=27 // pred_check
          %p161 = pneg %p77
        $region34: #{tpu_custom_call.1} parent=27 // pred_check_branch
          %163 = sbr.rel (%p161) target = $region36
        $region35: #{tpu_custom_call.1} parent=27 // pred_region
          %164 = dma.done [#allocation8], 128
        $region36: #{tpu_custom_call.1} parent=27 // pred_fallthru
          _
        %p165 = pneg %p51
        %p166 = pneg %p48
        %p167 = pneg %p77
        %p168 = pneg %p74
        %p169 = pneg %p105
        %p170 = pneg %p102
        %s171 = sand.u32 %s92, 1
        %s172 = scalar_lea.sflag [#allocation6], %s171
        %s173 = sand.u32 %s92, 1
        %s174 = smul.addr %s173, 8
        %s175 = scalar_lea.vmem [#allocation9], %s174
        %s176 = smul.u32 %s27, 8
        %s177 = smul.u32 %s28, 8
        %s178 = sadd.s32 %s176, %s177
        %s179 = sld [smem:[#allocation3 + %s178]]
        %p180 = scmp.gt.s32.totalorder %s179, 0
        %s181 = scalar_select %p180, %s179, 0
        %p182 = scmp.lt.s32.totalorder %s181, 63
        %s183 = scalar_select %p182, %s181, 63
        %s184 = scalar_lea.vmem [#allocation4], %s183
        %v185 = vld [vmem:[%s184] sm:$0x1]
        %v186 = vld [vmem:[#allocation7] sm:$0x1]
        %v187 = vadd.f32 %v185, %v186
        %188 = vst [vmem:[%s175] sm:$0x1] %v187
        %s189 = sadd.s32 %s178, 1
        %s190 = sld [smem:[#allocation3 + %s189]]
        %p191 = scmp.gt.s32.totalorder %s190, 0
        %s192 = scalar_select %p191, %s190, 0
        %p193 = scmp.lt.s32.totalorder %s192, 63
        %s194 = scalar_select %p193, %s192, 63
        %s195 = scalar_lea.vmem [#allocation4], %s194
        %v196 = vld [vmem:[%s195] sm:$0x1]
        %v197 = vld [vmem:[#allocation7 + $0x1] sm:$0x1]
        %v198 = vadd.f32 %v196, %v197
        %199 = vst [vmem:[%s175 + $0x1] sm:$0x1] %v198
        %s200 = sadd.s32 %s178, 2
        %s201 = sld [smem:[#allocation3 + %s200]]
        %p202 = scmp.gt.s32.totalorder %s201, 0
        %s203 = scalar_select %p202, %s201, 0
        %p204 = scmp.lt.s32.totalorder %s203, 63
        %s205 = scalar_select %p204, %s203, 63
        %s206 = scalar_lea.vmem [#allocation4], %s205
        %v207 = vld [vmem:[%s206] sm:$0x1]
        %v208 = vld [vmem:[#allocation7 + $0x2] sm:$0x1]
        %v209 = vadd.f32 %v207, %v208
        %210 = vst [vmem:[%s175 + $0x2] sm:$0x1] %v209
        %s211 = sadd.s32 %s178, 3
        %s212 = sld [smem:[#allocation3 + %s211]]
        %p213 = scmp.gt.s32.totalorder %s212, 0
        %s214 = scalar_select %p213, %s212, 0
        %p215 = scmp.lt.s32.totalorder %s214, 63
        %s216 = scalar_select %p215, %s214, 63
        %s217 = scalar_lea.vmem [#allocation4], %s216
        %v218 = vld [vmem:[%s217] sm:$0x1]
        %v219 = vld [vmem:[#allocation7 + $0x3] sm:$0x1]
        %v220 = vadd.f32 %v218, %v219
        %221 = vst [vmem:[%s175 + $0x3] sm:$0x1] %v220
        %s222 = sadd.s32 %s178, 4
        %s223 = sld [smem:[#allocation3 + %s222]]
        %p224 = scmp.gt.s32.totalorder %s223, 0
        %s225 = scalar_select %p224, %s223, 0
        %p226 = scmp.lt.s32.totalorder %s225, 63
        %s227 = scalar_select %p226, %s225, 63
        %s228 = scalar_lea.vmem [#allocation4], %s227
        %v229 = vld [vmem:[%s228] sm:$0x1]
        %v230 = vld [vmem:[#allocation7 + $0x4] sm:$0x1]
        %v231 = vadd.f32 %v229, %v230
        %232 = vst [vmem:[%s175 + $0x4] sm:$0x1] %v231
        %s233 = sadd.s32 %s178, 5
        %s234 = sld [smem:[#allocation3 + %s233]]
        %p235 = scmp.gt.s32.totalorder %s234, 0
        %s236 = scalar_select %p235, %s234, 0
        %p237 = scmp.lt.s32.totalorder %s236, 63
        %s238 = scalar_select %p237, %s236, 63
        %s239 = scalar_lea.vmem [#allocation4], %s238
        %v240 = vld [vmem:[%s239] sm:$0x1]
        %v241 = vld [vmem:[#allocation7 + $0x5] sm:$0x1]
        %v242 = vadd.f32 %v240, %v241
        %243 = vst [vmem:[%s175 + $0x5] sm:$0x1] %v242
        %s244 = sadd.s32 %s178, 6
        %s245 = sld [smem:[#allocation3 + %s244]]
        %p246 = scmp.gt.s32.totalorder %s245, 0
        %s247 = scalar_select %p246, %s245, 0
        %p248 = scmp.lt.s32.totalorder %s247, 63
        %s249 = scalar_select %p248, %s247, 63
        %s250 = scalar_lea.vmem [#allocation4], %s249
        %v251 = vld [vmem:[%s250] sm:$0x1]
        %v252 = vld [vmem:[#allocation7 + $0x6] sm:$0x1]
        %v253 = vadd.f32 %v251, %v252
        %254 = vst [vmem:[%s175 + $0x6] sm:$0x1] %v253
        %s255 = sadd.s32 %s178, 7
        %s256 = sld [smem:[#allocation3 + %s255]]
        %p257 = scmp.gt.s32.totalorder %s256, 0
        %s258 = scalar_select %p257, %s256, 0
        %p259 = scmp.lt.s32.totalorder %s258, 63
        %s260 = scalar_select %p259, %s258, 63
        %s261 = scalar_lea.vmem [#allocation4], %s260
        %v262 = vld [vmem:[%s261] sm:$0x1]
        %v263 = vld [vmem:[#allocation7 + $0x7] sm:$0x1]
        %v264 = vadd.f32 %v262, %v263
        %265 = vst [vmem:[%s175 + $0x7] sm:$0x1] %v264
        %s266 = sand.u32 %s92, 1
        %s267 = scalar_lea.sflag [#allocation6], %s266
        %s268 = sand.u32 %s92, 1
        %s269 = smul.addr %s268, 8
        %s270 = scalar_lea.vmem [#allocation9], %s269
        // Predicated region
        $region37: #{tpu_custom_call.1} parent=27 // pred_check
          %p271 = pneg %p102
        $region38: #{tpu_custom_call.1} parent=27 // pred_check_branch
          %273 = sbr.rel (%p271) target = $region40
        $region39: #{tpu_custom_call.1} parent=27 // pred_region
          %s275 = ssub.s32 128, 128
          %276 = vsyncadd %s267, %s275
          %s277 = sadd.s32 %s28, %s27
          %s278 = smul.addr %s277, 128
          %s279 = scalar_lea.hbm %s3, %s278
          %s281 = sshll.u32 %s270, 4
          %s282 = int_to_ptr.vmem [resolvable:$true] %s281
          %284 = dma.vmem_to_hbm [thread:$0]  %s282, 128, %s279, %s267
        $region40: #{tpu_custom_call.1} parent=27 // pred_fallthru
          _
      $region28: #{tpu_custom_call.1} parent=5 // pred_fallthru
        _
      %p285 = scmp.le.s32.totalorder 2, %s18
      // Predicated region
      $region41: #{tpu_custom_call.1} parent=5 // pred_check
        %p286 = pneg %p285
      $region42: #{tpu_custom_call.1} parent=5 // pred_check_branch
        %288 = sbr.rel (%p286) target = $region44
      $region43: #{tpu_custom_call.1} parent=5 // pred_region
        %s289 = ssub.s32 %s18, 2
        // Predicated region
        $region45: #{tpu_custom_call.1} parent=43 // pred_check
          %p290 = pneg %p108
        $region46: #{tpu_custom_call.1} parent=43 // pred_check_branch
          %292 = sbr.rel (%p290) target = $region48
        $region47: #{tpu_custom_call.1} parent=43 // pred_region
          %s293 = sand.u32 %s93, 1
          %s294 = scalar_lea.sflag [#allocation6], %s293
          %s295 = sand.u32 %s93, 1
          %s296 = smul.addr %s295, 8
          %s297 = scalar_lea.vmem [#allocation9], %s296
          %298 = dma.done %s294, 128
        $region48: #{tpu_custom_call.1} parent=43 // pred_fallthru
          _
      $region44: #{tpu_custom_call.1} parent=5 // pred_fallthru
        _
    $region6: #{tpu_custom_call.1} parent=1 // loop_footer
      %s22 = sadd.s32 1, %s18
    $region7: #{tpu_custom_call.1} parent=1 // loop_footer_branch
      %17 = sbr.rel target = $region3
    $region8: #{tpu_custom_call.1} parent=1 // loop_exit
      _
    %299 = vsyncpa [#allocation5], 1
    %s300 = scalar_lea.sflag [#allocation5], 1
    %301 = vsyncpa %s300, 1
    %302 = vsyncpa [#allocation8], 1
    %303 = vsyncpa [#allocation6], 1
    %s304 = scalar_lea.sflag [#allocation6], 1
    %305 = vsyncpa %s304, 1

</llo_original>
